<compile_context>
chip_gen: v7x
topology: tpu7x:2x2x1
jax: 0.10.0
libtpu: 0.0.40
codegen_flags: <defaults>
</compile_context>

<pallas_src>
import jax
import jax.numpy as jnp
from jax.experimental import pallas as pl
from jax.experimental.pallas import tpu as pltpu

LANE = 128


def _round_up(x, m):
    return (x + m - 1) // m * m


def dqn_kernel(x_ref, w1_ref, w2_ref, w3_ref, w4_ref, o_ref):
    """One batch tile: three Linear+ReLU, final Linear.

    Biases are already folded into the weights: the activation carries a
    constant 1.0 in its last ("bias") lane, each packed weight holds its bias
    in the last row, and a 1.0 at [last, last] propagates the constant through
    the hidden layers. All shapes are lane-dense multiples of (8, 128).
    """
    h = x_ref[...]
    h = jnp.maximum(jnp.dot(h, w1_ref[...], preferred_element_type=jnp.float32), 0.0)
    h = h.astype(w2_ref.dtype)
    h = jnp.maximum(jnp.dot(h, w2_ref[...], preferred_element_type=jnp.float32), 0.0)
    h = h.astype(w3_ref.dtype)
    h = jnp.maximum(jnp.dot(h, w3_ref[...], preferred_element_type=jnp.float32), 0.0)
    h = h.astype(w4_ref.dtype)
    o_ref[...] = jnp.dot(h, w4_ref[...],
                         preferred_element_type=jnp.float32).astype(o_ref.dtype)


def pack_params(params, pad, compute_dtype):
    """Zero-pad each [in, out] weight to [pad, pad]; fold bias into last row.

    A 1.0 at [pad-1, pad-1] (hidden layers only) keeps the bias lane alive
    through the ReLU chain.
    """
    (w1, b1, w2, b2, w3, b3, w4, b4) = params

    def fold(w, b, propagate):
        fan_in, fan_out = w.shape
        wp = jnp.zeros((pad, pad), jnp.float32)
        wp = wp.at[:fan_in, :fan_out].set(w)
        wp = wp.at[pad - 1, :fan_out].set(b.reshape(-1))
        if propagate:
            wp = wp.at[pad - 1, pad - 1].set(1.0)
        return wp.astype(compute_dtype)

    return (fold(w1, b1, True), fold(w2, b2, True),
            fold(w3, b3, True), fold(w4, b4, False))


def dqn_forward(x, params, *, compute_dtype=jnp.float32):
    """Pallas forward pass. Pads batch/features in the wrapper, slices back."""
    w1 = params[0]
    w4 = params[6]
    input_size, hidden_size = w1.shape
    output_size = w4.shape[1]
    batch = x.shape[0]

    # Common padded feature width: lane-dense, with +1 room for the bias lane.
    pad = _round_up(max(input_size, hidden_size, output_size) + 1, LANE)

    # Batch tile: multiple of 8; 128 once the batch is large enough.
    tile_b = min(128, _round_up(batch, 8))
    batch_pad = _round_up(batch, tile_b)

    # Pad x; constant 1.0 in the bias lane.
    xp = jnp.zeros((batch_pad, pad), jnp.float32)
    xp = xp.at[:batch, :input_size].set(x)
    xp = xp.at[:, pad - 1].set(1.0)
    xp = xp.astype(compute_dtype)

    w1p, w2p, w3p, w4p = pack_params(params, pad, compute_dtype)

    grid = (batch_pad // tile_b,)
    act_spec = pl.BlockSpec((tile_b, pad), lambda i: (i, 0))   # streamed tiles
    wgt_spec = pl.BlockSpec((pad, pad), lambda i: (0, 0))      # resident in VMEM

    itemsize = jnp.dtype(compute_dtype).itemsize
    cost = pl.CostEstimate(
        flops=2 * batch_pad * pad * pad * 4,
        transcendentals=0,
        bytes_accessed=(batch_pad * pad * itemsize        # x in
                        + 4 * pad * pad * itemsize        # weights
                        + batch_pad * pad * 4),           # f32 out
    )

    out = pl.pallas_call(
        dqn_kernel,
        out_shape=jax.ShapeDtypeStruct((batch_pad, pad), jnp.float32),
        grid=grid,
        in_specs=[act_spec, wgt_spec, wgt_spec, wgt_spec, wgt_spec],
        out_specs=act_spec,
        compiler_params=pltpu.CompilerParams(
            dimension_semantics=("parallel",)),
        cost_estimate=cost,
    )(xp, w1p, w2p, w3p, w4p)

    return out[:batch, :output_size]


def init_params(key, input_size, hidden_size, output_size):
    """PyTorch-style uniform(-1/sqrt(fan_in), +1/sqrt(fan_in)) init.

    Weights stored as [in_features, out_features]; biases as [1, out]."""
    dims = [(input_size, hidden_size),
            (hidden_size, hidden_size),
            (hidden_size, hidden_size),
            (hidden_size, output_size)]
    params = []
    keys = jax.random.split(key, 2 * len(dims))
    for i, (fan_in, fan_out) in enumerate(dims):
        bound = 1.0 / jnp.sqrt(jnp.float32(fan_in))
        w = jax.random.uniform(keys[2 * i], (fan_in, fan_out),
                               minval=-bound, maxval=bound, dtype=jnp.float32)
        b = jax.random.uniform(keys[2 * i + 1], (1, fan_out),
                               minval=-bound, maxval=bound, dtype=jnp.float32)
        params.extend([w, b])
    return tuple(params)


def reference_forward(x, params):
    (w1, b1, w2, b2, w3, b3, w4, b4) = params
    h = jnp.maximum(x @ w1 + b1, 0.0)
    h = jnp.maximum(h @ w2 + b2, 0.0)
    h = jnp.maximum(h @ w3 + b3, 0.0)
    return h @ w4 + b4


if __name__ == "__main__":
    batch = 8
    input_size = 16    # state-space size
    hidden_size = 32   # hidden layer size
    output_size = 4    # action-space size

    key = jax.random.PRNGKey(0)
    k_x, k_p = jax.random.split(key)

    x = jax.random.normal(k_x, (batch, input_size), dtype=jnp.float32)
    params = init_params(k_p, input_size, hidden_size, output_size)

    ref = reference_forward(x, params)

    # f32 path: exact match against the reference.
    out = dqn_forward(x, params)
    out = jax.block_until_ready(out)
    assert out.shape == (batch, output_size)
    assert jnp.allclose(out, ref, atol=1e-5, rtol=1e-5)

    # bf16 path (recommended on v6e/v7x for large training batches);
    # f32 MXU accumulation keeps the error small.
    out_bf16 = jax.block_until_ready(
        dqn_forward(x, params, compute_dtype=jnp.bfloat16))
    assert out_bf16.shape == (batch, output_size)
    assert jnp.allclose(out_bf16, ref, atol=1e-1, rtol=1e-1)

    print("KERNEL_OK")
</pallas_src>

<mosaic_0001>
module attributes {stable_mosaic.version = 11 : i64} {
  func.func @dqn_kernel(%arg0: i32, %arg1: memref<8x128xf32, #tpu.memory_space<vmem>>, %arg2: memref<128x128xf32, #tpu.memory_space<vmem>>, %arg3: memref<128x128xf32, #tpu.memory_space<vmem>>, %arg4: memref<128x128xf32, #tpu.memory_space<vmem>>, %arg5: memref<128x128xf32, #tpu.memory_space<vmem>>, %arg6: memref<8x128xf32, #tpu.memory_space<vmem>>) attributes {dimension_semantics = [#tpu.dimension_semantics<parallel>], iteration_bounds = array<i64: 1>, scalar_prefetch = 0 : i64, scratch_operands = 0 : i64, tpu.core_type = #tpu.core_type<tc>, window_params = [{transform_indices = @transform_0, window_bounds = array<i64: 8, 128>}, {pipeline_mode = #tpu.pipeline_mode<synchronous>, transform_indices = @transform_1, window_bounds = array<i64: 128, 128>}, {pipeline_mode = #tpu.pipeline_mode<synchronous>, transform_indices = @transform_2, window_bounds = array<i64: 128, 128>}, {pipeline_mode = #tpu.pipeline_mode<synchronous>, transform_indices = @transform_3, window_bounds = array<i64: 128, 128>}, {pipeline_mode = #tpu.pipeline_mode<synchronous>, transform_indices = @transform_4, window_bounds = array<i64: 128, 128>}, {transform_indices = @transform_5, window_bounds = array<i64: 8, 128>}]} {
    %c0 = arith.constant 0 : index
    %c0_0 = arith.constant 0 : index
    %0 = vector.load %arg1[%c0, %c0_0] : memref<8x128xf32, #tpu.memory_space<vmem>>, vector<8x128xf32>
    %c0_1 = arith.constant 0 : index
    %c0_2 = arith.constant 0 : index
    %1 = vector.load %arg2[%c0_1, %c0_2] : memref<128x128xf32, #tpu.memory_space<vmem>>, vector<128x128xf32>
    %cst = arith.constant dense<0.000000e+00> : vector<8x128xf32>
    %2 = tpu.matmul %0, %1, %cst {dimension_numbers = #tpu.dot_dimension_numbers<[1], [0], [0], [1], [0, 0, 1, 1], [], []>} : vector<8x128xf32>, vector<128x128xf32>, vector<8x128xf32> -> vector<8x128xf32>
    %cst_3 = arith.constant 0.000000e+00 : f32
    %3 = vector.broadcast %cst_3 : f32 to vector<8x128xf32>
    %4 = arith.maximumf %2, %3 : vector<8x128xf32>
    %c0_4 = arith.constant 0 : index
    %c0_5 = arith.constant 0 : index
    %5 = vector.load %arg3[%c0_4, %c0_5] : memref<128x128xf32, #tpu.memory_space<vmem>>, vector<128x128xf32>
    %cst_6 = arith.constant dense<0.000000e+00> : vector<8x128xf32>
    %6 = tpu.matmul %4, %5, %cst_6 {dimension_numbers = #tpu.dot_dimension_numbers<[1], [0], [0], [1], [0, 0, 1, 1], [], []>} : vector<8x128xf32>, vector<128x128xf32>, vector<8x128xf32> -> vector<8x128xf32>
    %cst_7 = arith.constant 0.000000e+00 : f32
    %7 = vector.broadcast %cst_7 : f32 to vector<8x128xf32>
    %8 = arith.maximumf %6, %7 : vector<8x128xf32>
    %c0_8 = arith.constant 0 : index
    %c0_9 = arith.constant 0 : index
    %9 = vector.load %arg4[%c0_8, %c0_9] : memref<128x128xf32, #tpu.memory_space<vmem>>, vector<128x128xf32>
    %cst_10 = arith.constant dense<0.000000e+00> : vector<8x128xf32>
    %10 = tpu.matmul %8, %9, %cst_10 {dimension_numbers = #tpu.dot_dimension_numbers<[1], [0], [0], [1], [0, 0, 1, 1], [], []>} : vector<8x128xf32>, vector<128x128xf32>, vector<8x128xf32> -> vector<8x128xf32>
    %cst_11 = arith.constant 0.000000e+00 : f32
    %11 = vector.broadcast %cst_11 : f32 to vector<8x128xf32>
    %12 = arith.maximumf %10, %11 : vector<8x128xf32>
    %c0_12 = arith.constant 0 : index
    %c0_13 = arith.constant 0 : index
    %13 = vector.load %arg5[%c0_12, %c0_13] : memref<128x128xf32, #tpu.memory_space<vmem>>, vector<128x128xf32>
    %cst_14 = arith.constant dense<0.000000e+00> : vector<8x128xf32>
    %14 = tpu.matmul %12, %13, %cst_14 {dimension_numbers = #tpu.dot_dimension_numbers<[1], [0], [0], [1], [0, 0, 1, 1], [], []>} : vector<8x128xf32>, vector<128x128xf32>, vector<8x128xf32> -> vector<8x128xf32>
    %c0_15 = arith.constant 0 : index
    %c0_16 = arith.constant 0 : index
    %15 = vector.load %arg6[%c0_15, %c0_16] : memref<8x128xf32, #tpu.memory_space<vmem>>, vector<8x128xf32>
    tpu.vector_store %arg6[%c0_15, %c0_16], %14 {strides = array<i32>} : memref<8x128xf32, #tpu.memory_space<vmem>>, vector<8x128xf32>,
    return
  }
  func.func @transform_0(%arg0: i32) -> (i32, i32) {
    %c0_i32 = arith.constant 0 : i32
    %c0_i32_0 = arith.constant 0 : i32
    return %arg0, %c0_i32 : i32, i32
  }
  func.func @transform_1(%arg0: i32) -> (i32, i32) {
    %c0_i32 = arith.constant 0 : i32
    %c0_i32_0 = arith.constant 0 : i32
    %c0_i32_1 = arith.constant 0 : i32
    return %c0_i32, %c0_i32_0 : i32, i32
  }
  func.func @transform_2(%arg0: i32) -> (i32, i32) {
    %c0_i32 = arith.constant 0 : i32
    %c0_i32_0 = arith.constant 0 : i32
    %c0_i32_1 = arith.constant 0 : i32
    return %c0_i32, %c0_i32_0 : i32, i32
  }
  func.func @transform_3(%arg0: i32) -> (i32, i32) {
    %c0_i32 = arith.constant 0 : i32
    %c0_i32_0 = arith.constant 0 : i32
    %c0_i32_1 = arith.constant 0 : i32
    return %c0_i32, %c0_i32_0 : i32, i32
  }
  func.func @transform_4(%arg0: i32) -> (i32, i32) {
    %c0_i32 = arith.constant 0 : i32
    %c0_i32_0 = arith.constant 0 : i32
    %c0_i32_1 = arith.constant 0 : i32
    return %c0_i32, %c0_i32_0 : i32, i32
  }
  func.func @transform_5(%arg0: i32) -> (i32, i32) {
    %c0_i32 = arith.constant 0 : i32
    %c0_i32_0 = arith.constant 0 : i32
    return %arg0, %c0_i32 : i32, i32
  }
}

</mosaic_0001>

<llo_original>
// kernel: tpu_custom_call.1
$region0: #{tpu_custom_call.1}
  #allocation0 [shape = 'u32[]', space=smem, size = 0x4, offset = 0x4, fixed_abs, tag = 'smem constant byte address 0x4 - core index']
  #allocation1 [shape = 'u32[144,128]{1,0:T(1,128)}', space=vmem, size = 0x12000, scoped, tag = 'internal scratch']
  %s0 = inlined_call_operand.hbm [shape: f32[8,128], index: 0, kind: input, shape index: {}]
  %s1 = inlined_call_operand.hbm [shape: f32[128,128], index: 1, kind: input, shape index: {}]
  %s2 = inlined_call_operand.hbm [shape: f32[128,128], index: 2, kind: input, shape index: {}]
  %s3 = inlined_call_operand.hbm [shape: f32[128,128], index: 3, kind: input, shape index: {}]
  %s4 = inlined_call_operand.hbm [shape: f32[128,128], index: 4, kind: input, shape index: {}]
  %s5 = inlined_call_operand.hbm [shape: f32[8,128], index: 5, kind: output, shape index: {}]
  %s6 = sld [smem:[#allocation0]]
  $region50: #{tpu_custom_call.1} parent=0
    _
  %s8 = ssub.s32 1, %s6
  %s9 = scalar_select 0, %s8, %s6
  $region1: #{tpu_custom_call.1} parent=0
    #allocation2 [shape = 'u8[4096]{0}', space=vmem, size = 0x1000, scoped, tag = 'input window, operand 0, single buffered']
    #allocation3 [shape = 's32[1]{0}', space=sflag, size = 0x4, scoped, tag = 'scoped memory for tpu_custom_call.1']
    #allocation4 [shape = 's32[1]{0}', space=sflag, size = 0x4, scoped, tag = 'scoped memory for tpu_custom_call.1']
    #allocation5 [shape = 'u8[65536]{0}', space=vmem, size = 0x10000, scoped, tag = 'input window, operand 1, single buffered']
    #allocation6 [shape = 's32[1]{0}', space=sflag, size = 0x4, scoped, tag = 'scoped memory for tpu_custom_call.1']
    #allocation7 [shape = 'u8[65536]{0}', space=vmem, size = 0x10000, scoped, tag = 'input window, operand 2, single buffered']
    #allocation8 [shape = 'u8[65536]{0}', space=vmem, size = 0x10000, scoped, tag = 'input window, operand 3, single buffered']
    #allocation9 [shape = 's32[1]{0}', space=sflag, size = 0x4, scoped, tag = 'scoped memory for tpu_custom_call.1']
    #allocation10 [shape = 'u8[65536]{0}', space=vmem, size = 0x10000, scoped, tag = 'input window, operand 4, single buffered']
    #allocation11 [shape = 'u8[4096]{0}', space=vmem, size = 0x1000, scoped, tag = 'output window, operand 0, single buffered']
    %10 = vsyncpa [#allocation3], 0
    %11 = vsyncpa [#allocation6], 0
    %12 = vsyncpa [#allocation9], 0
    %13 = vsyncpa [#allocation4], 0
    // Predicated region
    $region2: #{tpu_custom_call.1} parent=1 // pred_check
      _
    $region3: #{tpu_custom_call.1} parent=1 // pred_check_branch
      %15 = sbr.rel (0) target = $region5
    $region4: #{tpu_custom_call.1} parent=1 // pred_region
      %s17 = ssub.s32 128, 128
      %18 = vsyncadd [#allocation3], %s17
      %s20 = sshll.u32 [#allocation2], 4
      %s21 = int_to_ptr.vmem [resolvable:$true] %s20
      %23 = dma.hbm_to_vmem [thread:$0]  %s0, 128, %s21, [#allocation3]
    $region5: #{tpu_custom_call.1} parent=1 // pred_fallthru
      _
    // Predicated region
    $region6: #{tpu_custom_call.1} parent=1 // pred_check
      _
    $region7: #{tpu_custom_call.1} parent=1 // pred_check_branch
      %25 = sbr.rel (0) target = $region9
    $region8: #{tpu_custom_call.1} parent=1 // pred_region
      %s27 = ssub.s32 2048, 2048
      %28 = vsyncadd [#allocation6], %s27
      %s29 = sshll.u32 [#allocation5], 4
      %s30 = int_to_ptr.vmem [resolvable:$true] %s29
      %35 = dma.hbm_to_vmem [thread:$0]  %s1, 2048, %s30, [#allocation6], 128, 128, 8
    $region9: #{tpu_custom_call.1} parent=1 // pred_fallthru
      _
    // Predicated region
    $region10: #{tpu_custom_call.1} parent=1 // pred_check
      _
    $region11: #{tpu_custom_call.1} parent=1 // pred_check_branch
      %37 = sbr.rel (0) target = $region13
    $region12: #{tpu_custom_call.1} parent=1 // pred_region
      %s39 = ssub.s32 2048, 2048
      %40 = vsyncadd [#allocation6], %s39
      %s41 = sshll.u32 [#allocation7], 4
      %s42 = int_to_ptr.vmem [resolvable:$true] %s41
      %47 = dma.hbm_to_vmem [thread:$0]  %s2, 2048, %s42, [#allocation6], 128, 128, 8
    $region13: #{tpu_custom_call.1} parent=1 // pred_fallthru
      _
    // Predicated region
    $region14: #{tpu_custom_call.1} parent=1 // pred_check
      _
    $region15: #{tpu_custom_call.1} parent=1 // pred_check_branch
      %49 = sbr.rel (0) target = $region17
    $region16: #{tpu_custom_call.1} parent=1 // pred_region
      %s51 = ssub.s32 2048, 2048
      %52 = vsyncadd [#allocation9], %s51
      %s53 = sshll.u32 [#allocation8], 4
      %s54 = int_to_ptr.vmem [resolvable:$true] %s53
      %59 = dma.hbm_to_vmem [thread:$0]  %s3, 2048, %s54, [#allocation9], 128, 128, 8
    $region17: #{tpu_custom_call.1} parent=1 // pred_fallthru
      _
    // Predicated region
    $region18: #{tpu_custom_call.1} parent=1 // pred_check
      _
    $region19: #{tpu_custom_call.1} parent=1 // pred_check_branch
      %61 = sbr.rel (0) target = $region21
    $region20: #{tpu_custom_call.1} parent=1 // pred_region
      %s63 = ssub.s32 2048, 2048
      %64 = vsyncadd [#allocation9], %s63
      %s65 = sshll.u32 [#allocation10], 4
      %s66 = int_to_ptr.vmem [resolvable:$true] %s65
      %71 = dma.hbm_to_vmem [thread:$0]  %s4, 2048, %s66, [#allocation9], 128, 128, 8
    $region21: #{tpu_custom_call.1} parent=1 // pred_fallthru
      _
    // Predicated region
    $region22: #{tpu_custom_call.1} parent=1 // pred_check
      _
    $region23: #{tpu_custom_call.1} parent=1 // pred_check_branch
      %73 = sbr.rel (0) target = $region25
    $region24: #{tpu_custom_call.1} parent=1 // pred_region
      %74 = dma.done [#allocation3], 128
    $region25: #{tpu_custom_call.1} parent=1 // pred_fallthru
      _
    // Predicated region
    $region26: #{tpu_custom_call.1} parent=1 // pred_check
      _
    $region27: #{tpu_custom_call.1} parent=1 // pred_check_branch
      %76 = sbr.rel (0) target = $region29
    $region28: #{tpu_custom_call.1} parent=1 // pred_region
      %77 = dma.done [#allocation6], 2048
    $region29: #{tpu_custom_call.1} parent=1 // pred_fallthru
      _
    // Predicated region
    $region30: #{tpu_custom_call.1} parent=1 // pred_check
      _
    $region31: #{tpu_custom_call.1} parent=1 // pred_check_branch
      %79 = sbr.rel (0) target = $region33
    $region32: #{tpu_custom_call.1} parent=1 // pred_region
      %80 = dma.done [#allocation6], 2048
    $region33: #{tpu_custom_call.1} parent=1 // pred_fallthru
      _
    // Predicated region
    $region34: #{tpu_custom_call.1} parent=1 // pred_check
      _
    $region35: #{tpu_custom_call.1} parent=1 // pred_check_branch
      %82 = sbr.rel (0) target = $region37
    $region36: #{tpu_custom_call.1} parent=1 // pred_region
      %83 = dma.done [#allocation9], 2048
    $region37: #{tpu_custom_call.1} parent=1 // pred_fallthru
      _
    // Predicated region
    $region38: #{tpu_custom_call.1} parent=1 // pred_check
      _
    $region39: #{tpu_custom_call.1} parent=1 // pred_check_branch
      %85 = sbr.rel (0) target = $region41
    $region40: #{tpu_custom_call.1} parent=1 // pred_region
      %86 = dma.done [#allocation9], 2048
    $region41: #{tpu_custom_call.1} parent=1 // pred_fallthru
      _
    %v87 = vld [vmem:[#allocation2] sm:$0xff]
    %v88 = vld [vmem:[#allocation5] sm:$0xff]
    %v89 = vld [vmem:[#allocation5 + $0x8] sm:$0xff]
    %v90 = vld [vmem:[#allocation5 + $0x10] sm:$0xff]
    %v91 = vld [vmem:[#allocation5 + $0x18] sm:$0xff]
    %v92 = vld [vmem:[#allocation5 + $0x20] sm:$0xff]
    %v93 = vld [vmem:[#allocation5 + $0x28] sm:$0xff]
    %v94 = vld [vmem:[#allocation5 + $0x30] sm:$0xff]
    %v95 = vld [vmem:[#allocation5 + $0x38] sm:$0xff]
    %v96 = vld [vmem:[#allocation5 + $0x40] sm:$0xff]
    %v97 = vld [vmem:[#allocation5 + $0x48] sm:$0xff]
    %v98 = vld [vmem:[#allocation5 + $0x50] sm:$0xff]
    %v99 = vld [vmem:[#allocation5 + $0x58] sm:$0xff]
    %v100 = vld [vmem:[#allocation5 + $0x60] sm:$0xff]
    %v101 = vld [vmem:[#allocation5 + $0x68] sm:$0xff]
    %v102 = vld [vmem:[#allocation5 + $0x70] sm:$0xff]
    %v103 = vld [vmem:[#allocation5 + $0x78] sm:$0xff]
    %104 = vmatprep.subr.mxu0 0.0
    %105 = vmatpush1.msra.mxu0 %v88
    %106 = vmatprep.subr.mxu0 0.0
    %107 = vmatpush1.msra.mxu0 %v89
    %108 = vmatprep.subr.mxu0 0.0
    %109 = vmatpush1.msra.mxu0 %v90
    %110 = vmatprep.subr.mxu0 0.0
    %111 = vmatpush1.msra.mxu0 %v91
    %112 = vmatprep.subr.mxu0 0.0
    %113 = vmatpush1.msra.mxu0 %v92
    %114 = vmatprep.subr.mxu0 0.0
    %115 = vmatpush1.msra.mxu0 %v93
    %116 = vmatprep.subr.mxu0 0.0
    %117 = vmatpush1.msra.mxu0 %v94
    %118 = vmatprep.subr.mxu0 0.0
    %119 = vmatpush1.msra.mxu0 %v95
    %120 = vmatprep.subr.mxu0 0.0
    %121 = vmatpush1.msra.mxu0 %v96
    %122 = vmatprep.subr.mxu0 0.0
    %123 = vmatpush1.msra.mxu0 %v97
    %124 = vmatprep.subr.mxu0 0.0
    %125 = vmatpush1.msra.mxu0 %v98
    %126 = vmatprep.subr.mxu0 0.0
    %127 = vmatpush1.msra.mxu0 %v99
    %128 = vmatprep.subr.mxu0 0.0
    %129 = vmatpush1.msra.mxu0 %v100
    %130 = vmatprep.subr.mxu0 0.0
    %131 = vmatpush1.msra.mxu0 %v101
    %132 = vmatprep.subr.mxu0 0.0
    %133 = vmatpush1.msra.mxu0 %v102
    %134 = vmatprep.subr.mxu0 0.0
    %135 = vmatpush1.msra.mxu0 %v103
    %136 = vmatprep.subr.mxu0 0.0
    %137 = vmatpush1.msra.mxu0 0.0
    %138 = vmatprep.subr.mxu0 0.0
    %139 = vmatpush1.msra.mxu0 0.0
    %140 = vmatprep.subr.mxu0 0.0
    %141 = vmatpush1.msra.mxu0 0.0
    %142 = vmatprep.subr.mxu0 0.0
    %143 = vmatpush1.msra.mxu0 0.0
    %144 = vmatprep.subr.mxu0 0.0
    %145 = vmatpush1.msra.mxu0 0.0
    %146 = vmatprep.subr.mxu0 0.0
    %147 = vmatpush1.msra.mxu0 0.0
    %148 = vmatprep.subr.mxu0 0.0
    %149 = vmatpush1.msra.mxu0 0.0
    %150 = vmatprep.subr.mxu0 0.0
    %151 = vmatpush1.msra.mxu0 0.0
    %152 = vmatprep.subr.mxu0 0.0
    %153 = vmatpush1.msra.mxu0 0.0
    %154 = vmatprep.subr.mxu0 0.0
    %155 = vmatpush1.msra.mxu0 0.0
    %156 = vmatprep.subr.mxu0 0.0
    %157 = vmatpush1.msra.mxu0 0.0
    %158 = vmatprep.subr.mxu0 0.0
    %159 = vmatpush1.msra.mxu0 0.0
    %160 = vmatprep.subr.mxu0 0.0
    %161 = vmatpush1.msra.mxu0 0.0
    %162 = vmatprep.subr.mxu0 0.0
    %163 = vmatpush1.msra.mxu0 0.0
    %164 = vmatprep.subr.mxu0 0.0
    %165 = vmatpush1.msra.mxu0 0.0
    %166 = vmatprep.subr.mxu0 0.0
    %167 = vmatpush1.msra.mxu0 0.0
    %168 = vmatprep.mubr.f32.mxu0 0.0
    %169 = vmatmul.mubr.f32.gmra.mrb[0].mxu0 %v87
    %v170 = vpop.f32.mrb[0].mxu0
    %v171 = vadd.f32 0.0, %v170
    %v172 = vpop.f32.mrb[0].mxu0
    %173 = vdwg.mxu0
    %v174 = vmax.f32 %v171, 0.0
    %v175 = vld [vmem:[#allocation7] sm:$0xff]
    %v176 = vld [vmem:[#allocation7 + $0x8] sm:$0xff]
    %v177 = vld [vmem:[#allocation7 + $0x10] sm:$0xff]
    %v178 = vld [vmem:[#allocation7 + $0x18] sm:$0xff]
    %v179 = vld [vmem:[#allocation7 + $0x20] sm:$0xff]
    %v180 = vld [vmem:[#allocation7 + $0x28] sm:$0xff]
    %v181 = vld [vmem:[#allocation7 + $0x30] sm:$0xff]
    %v182 = vld [vmem:[#allocation7 + $0x38] sm:$0xff]
    %v183 = vld [vmem:[#allocation7 + $0x40] sm:$0xff]
    %v184 = vld [vmem:[#allocation7 + $0x48] sm:$0xff]
    %v185 = vld [vmem:[#allocation7 + $0x50] sm:$0xff]
    %v186 = vld [vmem:[#allocation7 + $0x58] sm:$0xff]
    %v187 = vld [vmem:[#allocation7 + $0x60] sm:$0xff]
    %v188 = vld [vmem:[#allocation7 + $0x68] sm:$0xff]
    %v189 = vld [vmem:[#allocation7 + $0x70] sm:$0xff]
    %v190 = vld [vmem:[#allocation7 + $0x78] sm:$0xff]
    %191 = vmatprep.subr.mxu0 0.0
    %192 = vmatpush1.msra.mxu0 %v175
    %193 = vmatprep.subr.mxu0 0.0
    %194 = vmatpush1.msra.mxu0 %v176
    %195 = vmatprep.subr.mxu0 0.0
    %196 = vmatpush1.msra.mxu0 %v177
    %197 = vmatprep.subr.mxu0 0.0
    %198 = vmatpush1.msra.mxu0 %v178
    %199 = vmatprep.subr.mxu0 0.0
    %200 = vmatpush1.msra.mxu0 %v179
    %201 = vmatprep.subr.mxu0 0.0
    %202 = vmatpush1.msra.mxu0 %v180
    %203 = vmatprep.subr.mxu0 0.0
    %204 = vmatpush1.msra.mxu0 %v181
    %205 = vmatprep.subr.mxu0 0.0
    %206 = vmatpush1.msra.mxu0 %v182
    %207 = vmatprep.subr.mxu0 0.0
    %208 = vmatpush1.msra.mxu0 %v183
    %209 = vmatprep.subr.mxu0 0.0
    %210 = vmatpush1.msra.mxu0 %v184
    %211 = vmatprep.subr.mxu0 0.0
    %212 = vmatpush1.msra.mxu0 %v185
    %213 = vmatprep.subr.mxu0 0.0
    %214 = vmatpush1.msra.mxu0 %v186
    %215 = vmatprep.subr.mxu0 0.0
    %216 = vmatpush1.msra.mxu0 %v187
    %217 = vmatprep.subr.mxu0 0.0
    %218 = vmatpush1.msra.mxu0 %v188
    %219 = vmatprep.subr.mxu0 0.0
    %220 = vmatpush1.msra.mxu0 %v189
    %221 = vmatprep.subr.mxu0 0.0
    %222 = vmatpush1.msra.mxu0 %v190
    %223 = vmatprep.subr.mxu0 0.0
    %224 = vmatpush1.msra.mxu0 0.0
    %225 = vmatprep.subr.mxu0 0.0
    %226 = vmatpush1.msra.mxu0 0.0
    %227 = vmatprep.subr.mxu0 0.0
    %228 = vmatpush1.msra.mxu0 0.0
    %229 = vmatprep.subr.mxu0 0.0
    %230 = vmatpush1.msra.mxu0 0.0
    %231 = vmatprep.subr.mxu0 0.0
    %232 = vmatpush1.msra.mxu0 0.0
    %233 = vmatprep.subr.mxu0 0.0
    %234 = vmatpush1.msra.mxu0 0.0
    %235 = vmatprep.subr.mxu0 0.0
    %236 = vmatpush1.msra.mxu0 0.0
    %237 = vmatprep.subr.mxu0 0.0
    %238 = vmatpush1.msra.mxu0 0.0
    %239 = vmatprep.subr.mxu0 0.0
    %240 = vmatpush1.msra.mxu0 0.0
    %241 = vmatprep.subr.mxu0 0.0
    %242 = vmatpush1.msra.mxu0 0.0
    %243 = vmatprep.subr.mxu0 0.0
    %244 = vmatpush1.msra.mxu0 0.0
    %245 = vmatprep.subr.mxu0 0.0
    %246 = vmatpush1.msra.mxu0 0.0
    %247 = vmatprep.subr.mxu0 0.0
    %248 = vmatpush1.msra.mxu0 0.0
    %249 = vmatprep.subr.mxu0 0.0
    %250 = vmatpush1.msra.mxu0 0.0
    %251 = vmatprep.subr.mxu0 0.0
    %252 = vmatpush1.msra.mxu0 0.0
    %253 = vmatprep.subr.mxu0 0.0
    %254 = vmatpush1.msra.mxu0 0.0
    %255 = vmatprep.mubr.f32.mxu0 0.0
    %256 = vmatmul.mubr.f32.gmra.mrb[0].mxu0 %v174
    %v257 = vpop.f32.mrb[0].mxu0
    %v258 = vadd.f32 0.0, %v257
    %v259 = vpop.f32.mrb[0].mxu0
    %260 = vdwg.mxu0
    %v261 = vmax.f32 %v258, 0.0
    %v262 = vld [vmem:[#allocation8] sm:$0xff]
    %v263 = vld [vmem:[#allocation8 + $0x8] sm:$0xff]
    %v264 = vld [vmem:[#allocation8 + $0x10] sm:$0xff]
    %v265 = vld [vmem:[#allocation8 + $0x18] sm:$0xff]
    %v266 = vld [vmem:[#allocation8 + $0x20] sm:$0xff]
    %v267 = vld [vmem:[#allocation8 + $0x28] sm:$0xff]
    %v268 = vld [vmem:[#allocation8 + $0x30] sm:$0xff]
    %v269 = vld [vmem:[#allocation8 + $0x38] sm:$0xff]
    %v270 = vld [vmem:[#allocation8 + $0x40] sm:$0xff]
    %v271 = vld [vmem:[#allocation8 + $0x48] sm:$0xff]
    %v272 = vld [vmem:[#allocation8 + $0x50] sm:$0xff]
    %v273 = vld [vmem:[#allocation8 + $0x58] sm:$0xff]
    %v274 = vld [vmem:[#allocation8 + $0x60] sm:$0xff]
    %v275 = vld [vmem:[#allocation8 + $0x68] sm:$0xff]
    %v276 = vld [vmem:[#allocation8 + $0x70] sm:$0xff]
    %v277 = vld [vmem:[#allocation8 + $0x78] sm:$0xff]
    %278 = vmatprep.subr.mxu0 0.0
    %279 = vmatpush1.msra.mxu0 %v262
    %280 = vmatprep.subr.mxu0 0.0
    %281 = vmatpush1.msra.mxu0 %v263
    %282 = vmatprep.subr.mxu0 0.0
    %283 = vmatpush1.msra.mxu0 %v264
    %284 = vmatprep.subr.mxu0 0.0
    %285 = vmatpush1.msra.mxu0 %v265
    %286 = vmatprep.subr.mxu0 0.0
    %287 = vmatpush1.msra.mxu0 %v266
    %288 = vmatprep.subr.mxu0 0.0
    %289 = vmatpush1.msra.mxu0 %v267
    %290 = vmatprep.subr.mxu0 0.0
    %291 = vmatpush1.msra.mxu0 %v268
    %292 = vmatprep.subr.mxu0 0.0
    %293 = vmatpush1.msra.mxu0 %v269
    %294 = vmatprep.subr.mxu0 0.0
    %295 = vmatpush1.msra.mxu0 %v270
    %296 = vmatprep.subr.mxu0 0.0
    %297 = vmatpush1.msra.mxu0 %v271
    %298 = vmatprep.subr.mxu0 0.0
    %299 = vmatpush1.msra.mxu0 %v272
    %300 = vmatprep.subr.mxu0 0.0
    %301 = vmatpush1.msra.mxu0 %v273
    %302 = vmatprep.subr.mxu0 0.0
    %303 = vmatpush1.msra.mxu0 %v274
    %304 = vmatprep.subr.mxu0 0.0
    %305 = vmatpush1.msra.mxu0 %v275
    %306 = vmatprep.subr.mxu0 0.0
    %307 = vmatpush1.msra.mxu0 %v276
    %308 = vmatprep.subr.mxu0 0.0
    %309 = vmatpush1.msra.mxu0 %v277
    %310 = vmatprep.subr.mxu0 0.0
    %311 = vmatpush1.msra.mxu0 0.0
    %312 = vmatprep.subr.mxu0 0.0
    %313 = vmatpush1.msra.mxu0 0.0
    %314 = vmatprep.subr.mxu0 0.0
    %315 = vmatpush1.msra.mxu0 0.0
    %316 = vmatprep.subr.mxu0 0.0
    %317 = vmatpush1.msra.mxu0 0.0
    %318 = vmatprep.subr.mxu0 0.0
    %319 = vmatpush1.msra.mxu0 0.0
    %320 = vmatprep.subr.mxu0 0.0
    %321 = vmatpush1.msra.mxu0 0.0
    %322 = vmatprep.subr.mxu0 0.0
    %323 = vmatpush1.msra.mxu0 0.0
    %324 = vmatprep.subr.mxu0 0.0
    %325 = vmatpush1.msra.mxu0 0.0
    %326 = vmatprep.subr.mxu0 0.0
    %327 = vmatpush1.msra.mxu0 0.0
    %328 = vmatprep.subr.mxu0 0.0
    %329 = vmatpush1.msra.mxu0 0.0
    %330 = vmatprep.subr.mxu0 0.0
    %331 = vmatpush1.msra.mxu0 0.0
    %332 = vmatprep.subr.mxu0 0.0
    %333 = vmatpush1.msra.mxu0 0.0
    %334 = vmatprep.subr.mxu0 0.0
    %335 = vmatpush1.msra.mxu0 0.0
    %336 = vmatprep.subr.mxu0 0.0
    %337 = vmatpush1.msra.mxu0 0.0
    %338 = vmatprep.subr.mxu0 0.0
    %339 = vmatpush1.msra.mxu0 0.0
    %340 = vmatprep.subr.mxu0 0.0
    %341 = vmatpush1.msra.mxu0 0.0
    %342 = vmatprep.mubr.f32.mxu0 0.0
    %343 = vmatmul.mubr.f32.gmra.mrb[0].mxu0 %v261
    %v344 = vpop.f32.mrb[0].mxu0
    %v345 = vadd.f32 0.0, %v344
    %v346 = vpop.f32.mrb[0].mxu0
    %347 = vdwg.mxu0
    %v348 = vmax.f32 %v345, 0.0
    %v349 = vld [vmem:[#allocation10] sm:$0xff]
    %v350 = vld [vmem:[#allocation10 + $0x8] sm:$0xff]
    %v351 = vld [vmem:[#allocation10 + $0x10] sm:$0xff]
    %v352 = vld [vmem:[#allocation10 + $0x18] sm:$0xff]
    %v353 = vld [vmem:[#allocation10 + $0x20] sm:$0xff]
    %v354 = vld [vmem:[#allocation10 + $0x28] sm:$0xff]
    %v355 = vld [vmem:[#allocation10 + $0x30] sm:$0xff]
    %v356 = vld [vmem:[#allocation10 + $0x38] sm:$0xff]
    %v357 = vld [vmem:[#allocation10 + $0x40] sm:$0xff]
    %v358 = vld [vmem:[#allocation10 + $0x48] sm:$0xff]
    %v359 = vld [vmem:[#allocation10 + $0x50] sm:$0xff]
    %v360 = vld [vmem:[#allocation10 + $0x58] sm:$0xff]
    %v361 = vld [vmem:[#allocation10 + $0x60] sm:$0xff]
    %v362 = vld [vmem:[#allocation10 + $0x68] sm:$0xff]
    %v363 = vld [vmem:[#allocation10 + $0x70] sm:$0xff]
    %v364 = vld [vmem:[#allocation10 + $0x78] sm:$0xff]
    %365 = vmatprep.subr.mxu0 0.0
    %366 = vmatpush1.msra.mxu0 %v349
    %367 = vmatprep.subr.mxu0 0.0
    %368 = vmatpush1.msra.mxu0 %v350
    %369 = vmatprep.subr.mxu0 0.0
    %370 = vmatpush1.msra.mxu0 %v351
    %371 = vmatprep.subr.mxu0 0.0
    %372 = vmatpush1.msra.mxu0 %v352
    %373 = vmatprep.subr.mxu0 0.0
    %374 = vmatpush1.msra.mxu0 %v353
    %375 = vmatprep.subr.mxu0 0.0
    %376 = vmatpush1.msra.mxu0 %v354
    %377 = vmatprep.subr.mxu0 0.0
    %378 = vmatpush1.msra.mxu0 %v355
    %379 = vmatprep.subr.mxu0 0.0
    %380 = vmatpush1.msra.mxu0 %v356
    %381 = vmatprep.subr.mxu0 0.0
    %382 = vmatpush1.msra.mxu0 %v357
    %383 = vmatprep.subr.mxu0 0.0
    %384 = vmatpush1.msra.mxu0 %v358
    %385 = vmatprep.subr.mxu0 0.0
    %386 = vmatpush1.msra.mxu0 %v359
    %387 = vmatprep.subr.mxu0 0.0
    %388 = vmatpush1.msra.mxu0 %v360
    %389 = vmatprep.subr.mxu0 0.0
    %390 = vmatpush1.msra.mxu0 %v361
    %391 = vmatprep.subr.mxu0 0.0
    %392 = vmatpush1.msra.mxu0 %v362
    %393 = vmatprep.subr.mxu0 0.0
    %394 = vmatpush1.msra.mxu0 %v363
    %395 = vmatprep.subr.mxu0 0.0
    %396 = vmatpush1.msra.mxu0 %v364
    %397 = vmatprep.subr.mxu0 0.0
    %398 = vmatpush1.msra.mxu0 0.0
    %399 = vmatprep.subr.mxu0 0.0
    %400 = vmatpush1.msra.mxu0 0.0
    %401 = vmatprep.subr.mxu0 0.0
    %402 = vmatpush1.msra.mxu0 0.0
    %403 = vmatprep.subr.mxu0 0.0
    %404 = vmatpush1.msra.mxu0 0.0
    %405 = vmatprep.subr.mxu0 0.0
    %406 = vmatpush1.msra.mxu0 0.0
    %407 = vmatprep.subr.mxu0 0.0
    %408 = vmatpush1.msra.mxu0 0.0
    %409 = vmatprep.subr.mxu0 0.0
    %410 = vmatpush1.msra.mxu0 0.0
    %411 = vmatprep.subr.mxu0 0.0
    %412 = vmatpush1.msra.mxu0 0.0
    %413 = vmatprep.subr.mxu0 0.0
    %414 = vmatpush1.msra.mxu0 0.0
    %415 = vmatprep.subr.mxu0 0.0
    %416 = vmatpush1.msra.mxu0 0.0
    %417 = vmatprep.subr.mxu0 0.0
    %418 = vmatpush1.msra.mxu0 0.0
    %419 = vmatprep.subr.mxu0 0.0
    %420 = vmatpush1.msra.mxu0 0.0
    %421 = vmatprep.subr.mxu0 0.0
    %422 = vmatpush1.msra.mxu0 0.0
    %423 = vmatprep.subr.mxu0 0.0
    %424 = vmatpush1.msra.mxu0 0.0
    %425 = vmatprep.subr.mxu0 0.0
    %426 = vmatpush1.msra.mxu0 0.0
    %427 = vmatprep.subr.mxu0 0.0
    %428 = vmatpush1.msra.mxu0 0.0
    %429 = vmatprep.mubr.f32.mxu0 0.0
    %430 = vmatmul.mubr.f32.gmra.mrb[0].mxu0 %v348
    %v431 = vpop.f32.mrb[0].mxu0
    %v432 = vadd.f32 0.0, %v431
    %v433 = vpop.f32.mrb[0].mxu0
    %434 = vdwg.mxu0
    %435 = vst [vmem:[#allocation11] sm:$0xff] %v432
    // Predicated region
    $region42: #{tpu_custom_call.1} parent=1 // pred_check
      _
    $region43: #{tpu_custom_call.1} parent=1 // pred_check_branch
      %437 = sbr.rel (0) target = $region45
    $region44: #{tpu_custom_call.1} parent=1 // pred_region
      %s439 = ssub.s32 128, 128
      %440 = vsyncadd [#allocation4], %s439
      %s442 = sshll.u32 [#allocation11], 4
      %s443 = int_to_ptr.vmem [resolvable:$true] %s442
      %445 = dma.vmem_to_hbm [thread:$0]  %s443, 128, %s5, [#allocation4]
    $region45: #{tpu_custom_call.1} parent=1 // pred_fallthru
      _
    // Predicated region
    $region46: #{tpu_custom_call.1} parent=1 // pred_check
      _
    $region47: #{tpu_custom_call.1} parent=1 // pred_check_branch
      %447 = sbr.rel (0) target = $region49
    $region48: #{tpu_custom_call.1} parent=1 // pred_region
      %448 = dma.done [#allocation4], 128
    $region49: #{tpu_custom_call.1} parent=1 // pred_fallthru
      _
    %449 = vsyncpa [#allocation3], 1
    %450 = vsyncpa [#allocation6], 1
    %451 = vsyncpa [#allocation9], 1
    %452 = vsyncpa [#allocation4], 1

</llo_original>
